<compile_context>
chip_gen: v7x
topology: tpu7x:2x2x1
jax: 0.10.0
libtpu: 0.0.40
codegen_flags: <defaults>
</compile_context>

<pallas_src>
import functools

import jax
import jax.numpy as jnp
from jax.experimental import pallas as pl
from jax.experimental.pallas import tpu as pltpu

HIDDEN = 128  # fixed by the PyTorch module (nn.Linear(*, 128))


def _round_up(x, m):
    return ((x + m - 1) // m) * m


def _two_tower_kernel(user_ref, item_ref, uw1_ref, uw2_ref, iw1_ref, iw2_ref,
                      bias_ref, out_ref):
    H = uw1_ref.shape[1]                      # 128
    E = uw2_ref.shape[1]                      # embedding size
    Ep = (bias_ref.shape[1] - 2 * H) // 2     # lane-padded E segment width

    # Lane-aligned packed biases (f32): [ ub1(H) | ib1(H) | ub2(Ep) | ib2(Ep) ].
    ub1 = bias_ref[:, 0:H]
    ib1 = bias_ref[:, H:2 * H]
    ub2 = bias_ref[:, 2 * H:2 * H + E]
    ib2 = bias_ref[:, 2 * H + Ep:2 * H + Ep + E]

    # bf16 operands on the MXU; f32 accumulation / bias / ReLU.
    xu = user_ref[...].astype(jnp.bfloat16)
    xi = item_ref[...].astype(jnp.bfloat16)

    # User tower: Linear -> ReLU -> (Dropout: identity in eval) -> Linear
    h_u = jnp.maximum(
        jnp.dot(xu, uw1_ref[...], preferred_element_type=jnp.float32) + ub1, 0.0)
    ue = jnp.dot(h_u.astype(jnp.bfloat16), uw2_ref[...],
                 preferred_element_type=jnp.float32) + ub2

    # Item tower: Linear -> ReLU -> (Dropout: identity in eval) -> Linear
    h_i = jnp.maximum(
        jnp.dot(xi, iw1_ref[...], preferred_element_type=jnp.float32) + ib1, 0.0)
    ie = jnp.dot(h_i.astype(jnp.bfloat16), iw2_ref[...],
                 preferred_element_type=jnp.float32) + ib2

    # score = sum_j ue_j * ie_j  -> f32 MXU dot with a ones column (no XLU reduce,
    # no extra bf16 rounding on the final dot product).
    cross = ue * ie
    ones_col = jnp.ones((E, 1), dtype=jnp.float32)
    score = jnp.dot(cross, ones_col, preferred_element_type=jnp.float32)  # [TB, 1]

    out_ref[...] = jax.nn.sigmoid(score)


def _vmem_limit_bytes():
    """Generation-aware VMEM limit: 3/4 of physical per-TC VMEM, <= 128 MiB."""
    phys = 64 << 20  # conservative default (v7x per-TC physical VMEM)
    try:
        phys = int(pltpu.get_tpu_info().vmem_capacity_bytes)
    except Exception:
        pass
    return int(min(phys, 128 << 20)) * 3 // 4


def _choose_block_b(B, U, I, E, vmem_limit):
    """Largest batch tile that fits the VMEM budget (lane padding included)."""
    H = HIDDEN
    Upad = _round_up(U, 128)
    Ipad = _round_up(I, 128)
    Hpad = _round_up(H, 128)
    Epad = _round_up(E, 128)

    # Resident weights (bf16) + packed bias (f32), counted at 2x because
    # constant-index-map inputs are still double-buffered by default.
    weight_bytes = 2 * (2 * (Upad * Hpad + Ipad * Hpad + 2 * Hpad * Epad)
                        + 4 * (2 * Hpad + 2 * Epad))

    # Per batch-row VMEM cost: double-buffered f32 input tiles, double-buffered
    # lane-padded output tile, bf16 input casts, f32+bf16 hidden activations,
    # and the f32 ue/ie/cross temporaries.
    per_row = (2 * 4 * (Upad + Ipad)      # input tiles, f32, 2 buffers
               + 2 * 4 * 128              # output tile (1 lane -> 128), 2 buffers
               + 2 * (Upad + Ipad)        # bf16 casts of the input tiles
               + (4 + 2) * 2 * Hpad       # h_u/h_i in f32 + bf16 copies
               + 4 * 3 * Epad)            # ue, ie, cross (f32)

    budget = vmem_limit - weight_bytes - (4 << 20)   # headroom for compiler scratch
    block_b = max(budget // per_row, 8)
    block_b = min(block_b, 8192)                     # diminishing returns beyond this
    block_b = min(block_b, _round_up(max(B, 1), 8))  # never exceed the batch
    return int(block_b) // 8 * 8


@functools.partial(jax.jit, static_argnames=("block_b",))
def two_tower_forward(user_input, item_input, params, *, block_b=None):
    """Forward pass of TwoTowerModel (eval mode).  Returns shape [B] of scores."""
    B, U = user_input.shape
    B2, I = item_input.shape
    assert B == B2, "user/item batch mismatch"
    H = params["uw1"].shape[1]
    E = params["uw2"].shape[1]
    Ep = _round_up(E, 128)

    vmem_limit = _vmem_limit_bytes()
    if block_b is None:
        block_b = _choose_block_b(B, U, I, E, vmem_limit)

    # Weights in bf16 (MXU operands); biases stay f32, packed lane-aligned into
    # a single [1, 2H + 2*round_up(E,128)] array (one DMA, tile-aligned slices).
    uw1 = params["uw1"].astype(jnp.bfloat16)
    uw2 = params["uw2"].astype(jnp.bfloat16)
    iw1 = params["iw1"].astype(jnp.bfloat16)
    iw2 = params["iw2"].astype(jnp.bfloat16)

    def pad_lanes(v, width):
        return jnp.pad(v, ((0, 0), (0, width - v.shape[1])))

    bias_pack = jnp.concatenate(
        [params["ub1"], params["ib1"],
         pad_lanes(params["ub2"], Ep), pad_lanes(params["ib2"], Ep)], axis=1)
    W = 2 * H + 2 * Ep

    # No wrapper-side jnp.pad of the inputs: grid = cdiv(B, block_b), the ragged
    # last tile (if any) computes garbage rows whose writes fall outside the
    # output and are dropped.
    grid = (pl.cdiv(B, block_b),)

    out = pl.pallas_call(
        _two_tower_kernel,
        out_shape=jax.ShapeDtypeStruct((B, 1), jnp.float32),
        grid_spec=pltpu.PrefetchScalarGridSpec(
            num_scalar_prefetch=0,
            grid=grid,
            in_specs=[
                pl.BlockSpec((block_b, U), lambda i: (i, 0)),   # user batch tile
                pl.BlockSpec((block_b, I), lambda i: (i, 0)),   # item batch tile
                pl.BlockSpec((U, H), lambda i: (0, 0)),         # weights stay
                pl.BlockSpec((H, E), lambda i: (0, 0)),         # VMEM-resident
                pl.BlockSpec((I, H), lambda i: (0, 0)),
                pl.BlockSpec((H, E), lambda i: (0, 0)),
                pl.BlockSpec((1, W), lambda i: (0, 0)),         # packed biases
            ],
            out_specs=pl.BlockSpec((block_b, 1), lambda i: (i, 0)),
        ),
        compiler_params=pltpu.CompilerParams(
            dimension_semantics=("parallel",),   # shard batch over TCs (v7x)
            vmem_limit_bytes=vmem_limit,
        ),
    )(user_input, item_input, uw1, uw2, iw1, iw2, bias_pack)
    return out[:, 0]


def init_params(key, user_input_size, item_input_size, embedding_size):
    """Deterministic synthetic parameters (shapes mirror the PyTorch module)."""
    ks = jax.random.split(key, 4)

    def lin(k, fan_in, fan_out):
        # weight stored [in, out]; bias stored [1, out] for clean 2-D broadcast
        kw, kb = jax.random.split(k)
        bound = 1.0 / jnp.sqrt(fan_in)
        w = jax.random.uniform(kw, (fan_in, fan_out), jnp.float32, -bound, bound)
        b = jax.random.uniform(kb, (1, fan_out), jnp.float32, -bound, bound)
        return w, b

    uw1, ub1 = lin(ks[0], user_input_size, HIDDEN)
    uw2, ub2 = lin(ks[1], HIDDEN, embedding_size)
    iw1, ib1 = lin(ks[2], item_input_size, HIDDEN)
    iw2, ib2 = lin(ks[3], HIDDEN, embedding_size)
    return dict(uw1=uw1, ub1=ub1, uw2=uw2, ub2=ub2,
                iw1=iw1, ib1=ib1, iw2=iw2, ib2=ib2)


def reference_forward(user_input, item_input, p):
    """Pure-JAX f32 reference mirroring the PyTorch forward (eval mode)."""
    hu = jnp.maximum(user_input @ p["uw1"] + p["ub1"], 0.0)
    ue = hu @ p["uw2"] + p["ub2"]
    hi = jnp.maximum(item_input @ p["iw1"] + p["ib1"], 0.0)
    ie = hi @ p["iw2"] + p["ib2"]
    return jax.nn.sigmoid(jnp.sum(ue * ie, axis=1))


# TODO(synk): training-mode dropout (stochastic masking via pltpu.prng_*) is not
# implemented; the kernel matches module.eval() semantics.

if __name__ == "__main__":
    B = 8
    USER_IN = 24
    ITEM_IN = 40
    EMB = 32

    key = jax.random.PRNGKey(0)
    k_u, k_i, k_p = jax.random.split(key, 3)

    user_x = jax.random.normal(k_u, (B, USER_IN), jnp.float32)
    item_x = jax.random.normal(k_i, (B, ITEM_IN), jnp.float32)
    params = init_params(k_p, USER_IN, ITEM_IN, EMB)

    out = two_tower_forward(user_x, item_x, params)
    out = jax.block_until_ready(out)

    ref = reference_forward(user_x, item_x, params)
    assert out.shape == (B,), out.shape
    # bf16 MXU operands (f32 accumulation) -> loosened tolerance vs f32 reference.
    assert jnp.allclose(out, ref, atol=2e-2, rtol=2e-2), (out, ref)

    print("KERNEL_OK")
</pallas_src>

<mosaic_0001>
module attributes {stable_mosaic.version = 11 : i64} {
  func.func @_two_tower_kernel(%arg0: i32, %arg1: memref<8x24xf32, #tpu.memory_space<vmem>>, %arg2: memref<8x40xf32, #tpu.memory_space<vmem>>, %arg3: memref<24x128xbf16, #tpu.memory_space<vmem>>, %arg4: memref<128x32xbf16, #tpu.memory_space<vmem>>, %arg5: memref<40x128xbf16, #tpu.memory_space<vmem>>, %arg6: memref<128x32xbf16, #tpu.memory_space<vmem>>, %arg7: memref<1x512xf32, #tpu.memory_space<vmem>>, %arg8: memref<8x1xf32, #tpu.memory_space<vmem>>) attributes {dimension_semantics = [#tpu.dimension_semantics<parallel>], iteration_bounds = array<i64: 1>, scalar_prefetch = 0 : i64, scratch_operands = 0 : i64, tpu.core_type = #tpu.core_type<tc>, window_params = [{transform_indices = @transform_0, window_bounds = array<i64: 8, 24>}, {transform_indices = @transform_1, window_bounds = array<i64: 8, 40>}, {pipeline_mode = #tpu.pipeline_mode<synchronous>, transform_indices = @transform_2, window_bounds = array<i64: 24, 128>}, {pipeline_mode = #tpu.pipeline_mode<synchronous>, transform_indices = @transform_3, window_bounds = array<i64: 128, 32>}, {pipeline_mode = #tpu.pipeline_mode<synchronous>, transform_indices = @transform_4, window_bounds = array<i64: 40, 128>}, {pipeline_mode = #tpu.pipeline_mode<synchronous>, transform_indices = @transform_5, window_bounds = array<i64: 128, 32>}, {pipeline_mode = #tpu.pipeline_mode<synchronous>, transform_indices = @transform_6, window_bounds = array<i64: 1, 512>}, {transform_indices = @transform_7, window_bounds = array<i64: 8, 1>}]} {
    %c0 = arith.constant 0 : index
    %c0_0 = arith.constant 0 : index
    %0 = vector.load %arg7[%c0, %c0_0] : memref<1x512xf32, #tpu.memory_space<vmem>>, vector<1x128xf32>
    %c0_1 = arith.constant 0 : index
    %c128 = arith.constant 128 : index
    %1 = vector.load %arg7[%c0_1, %c128] : memref<1x512xf32, #tpu.memory_space<vmem>>, vector<1x128xf32>
    %c0_2 = arith.constant 0 : index
    %c256 = arith.constant 256 : index
    %2 = vector.load %arg7[%c0_2, %c256] : memref<1x512xf32, #tpu.memory_space<vmem>>, vector<1x32xf32>
    %c0_3 = arith.constant 0 : index
    %c384 = arith.constant 384 : index
    %3 = vector.load %arg7[%c0_3, %c384] : memref<1x512xf32, #tpu.memory_space<vmem>>, vector<1x32xf32>
    %c0_4 = arith.constant 0 : index
    %c0_5 = arith.constant 0 : index
    %4 = vector.load %arg1[%c0_4, %c0_5] : memref<8x24xf32, #tpu.memory_space<vmem>>, vector<8x24xf32>
    %5 = arith.truncf %4 : vector<8x24xf32> to vector<8x24xbf16>
    %c0_6 = arith.constant 0 : index
    %c0_7 = arith.constant 0 : index
    %6 = vector.load %arg2[%c0_6, %c0_7] : memref<8x40xf32, #tpu.memory_space<vmem>>, vector<8x40xf32>
    %7 = arith.truncf %6 : vector<8x40xf32> to vector<8x40xbf16>
    %c0_8 = arith.constant 0 : index
    %c0_9 = arith.constant 0 : index
    %8 = vector.load %arg3[%c0_8, %c0_9] : memref<24x128xbf16, #tpu.memory_space<vmem>>, vector<24x128xbf16>
    %cst = arith.constant dense<0.000000e+00> : vector<8x128xf32>
    %9 = tpu.matmul %5, %8, %cst {dimension_numbers = #tpu.dot_dimension_numbers<[1], [0], [0], [1], [0, 0, 1, 1], [], []>} : vector<8x24xbf16>, vector<24x128xbf16>, vector<8x128xf32> -> vector<8x128xf32>
    %10 = vector.broadcast %0 : vector<1x128xf32> to vector<8x128xf32>
    %11 = arith.addf %9, %10 : vector<8x128xf32>
    %cst_10 = arith.constant 0.000000e+00 : f32
    %12 = vector.broadcast %cst_10 : f32 to vector<8x128xf32>
    %13 = arith.maximumf %11, %12 : vector<8x128xf32>
    %14 = arith.truncf %13 : vector<8x128xf32> to vector<8x128xbf16>
    %c0_11 = arith.constant 0 : index
    %c0_12 = arith.constant 0 : index
    %15 = vector.load %arg4[%c0_11, %c0_12] : memref<128x32xbf16, #tpu.memory_space<vmem>>, vector<128x32xbf16>
    %cst_13 = arith.constant dense<0.000000e+00> : vector<8x32xf32>
    %16 = tpu.matmul %14, %15, %cst_13 {dimension_numbers = #tpu.dot_dimension_numbers<[1], [0], [0], [1], [0, 0, 1, 1], [], []>} : vector<8x128xbf16>, vector<128x32xbf16>, vector<8x32xf32> -> vector<8x32xf32>
    %17 = vector.broadcast %2 : vector<1x32xf32> to vector<8x32xf32>
    %18 = arith.addf %16, %17 : vector<8x32xf32>
    %c0_14 = arith.constant 0 : index
    %c0_15 = arith.constant 0 : index
    %19 = vector.load %arg5[%c0_14, %c0_15] : memref<40x128xbf16, #tpu.memory_space<vmem>>, vector<40x128xbf16>
    %cst_16 = arith.constant dense<0.000000e+00> : vector<8x128xf32>
    %20 = tpu.matmul %7, %19, %cst_16 {dimension_numbers = #tpu.dot_dimension_numbers<[1], [0], [0], [1], [0, 0, 1, 1], [], []>} : vector<8x40xbf16>, vector<40x128xbf16>, vector<8x128xf32> -> vector<8x128xf32>
    %21 = vector.broadcast %1 : vector<1x128xf32> to vector<8x128xf32>
    %22 = arith.addf %20, %21 : vector<8x128xf32>
    %cst_17 = arith.constant 0.000000e+00 : f32
    %23 = vector.broadcast %cst_17 : f32 to vector<8x128xf32>
    %24 = arith.maximumf %22, %23 : vector<8x128xf32>
    %25 = arith.truncf %24 : vector<8x128xf32> to vector<8x128xbf16>
    %c0_18 = arith.constant 0 : index
    %c0_19 = arith.constant 0 : index
    %26 = vector.load %arg6[%c0_18, %c0_19] : memref<128x32xbf16, #tpu.memory_space<vmem>>, vector<128x32xbf16>
    %cst_20 = arith.constant dense<0.000000e+00> : vector<8x32xf32>
    %27 = tpu.matmul %25, %26, %cst_20 {dimension_numbers = #tpu.dot_dimension_numbers<[1], [0], [0], [1], [0, 0, 1, 1], [], []>} : vector<8x128xbf16>, vector<128x32xbf16>, vector<8x32xf32> -> vector<8x32xf32>
    %28 = vector.broadcast %3 : vector<1x32xf32> to vector<8x32xf32>
    %29 = arith.addf %27, %28 : vector<8x32xf32>
    %30 = arith.mulf %18, %29 : vector<8x32xf32>
    %cst_21 = arith.constant 1.000000e+00 : f32
    %31 = vector.broadcast %cst_21 : f32 to vector<32x1xf32>
    %cst_22 = arith.constant dense<0.000000e+00> : vector<8x1xf32>
    %32 = tpu.matmul %30, %31, %cst_22 {dimension_numbers = #tpu.dot_dimension_numbers<[1], [0], [0], [1], [0, 0, 1, 1], [], []>} : vector<8x32xf32>, vector<32x1xf32>, vector<8x1xf32> -> vector<8x1xf32>
    %33 = arith.negf %32 : vector<8x1xf32>
    %34 = math.exp %33 : vector<8x1xf32>
    %cst_23 = arith.constant 1.000000e+00 : f32
    %35 = vector.broadcast %cst_23 : f32 to vector<8x1xf32>
    %36 = arith.addf %35, %34 : vector<8x1xf32>
    %37 = arith.divf %35, %36 : vector<8x1xf32>
    %c0_24 = arith.constant 0 : index
    %c0_25 = arith.constant 0 : index
    %38 = vector.load %arg8[%c0_24, %c0_25] : memref<8x1xf32, #tpu.memory_space<vmem>>, vector<8x1xf32>
    tpu.vector_store %arg8[%c0_24, %c0_25], %37 {strides = array<i32>} : memref<8x1xf32, #tpu.memory_space<vmem>>, vector<8x1xf32>,
    return
  }
  func.func @transform_0(%arg0: i32) -> (i32, i32) {
    %c0_i32 = arith.constant 0 : i32
    %c0_i32_0 = arith.constant 0 : i32
    return %arg0, %c0_i32 : i32, i32
  }
  func.func @transform_1(%arg0: i32) -> (i32, i32) {
    %c0_i32 = arith.constant 0 : i32
    %c0_i32_0 = arith.constant 0 : i32
    return %arg0, %c0_i32 : i32, i32
  }
  func.func @transform_2(%arg0: i32) -> (i32, i32) {
    %c0_i32 = arith.constant 0 : i32
    %c0_i32_0 = arith.constant 0 : i32
    %c0_i32_1 = arith.constant 0 : i32
    return %c0_i32, %c0_i32_0 : i32, i32
  }
  func.func @transform_3(%arg0: i32) -> (i32, i32) {
    %c0_i32 = arith.constant 0 : i32
    %c0_i32_0 = arith.constant 0 : i32
    %c0_i32_1 = arith.constant 0 : i32
    return %c0_i32, %c0_i32_0 : i32, i32
  }
  func.func @transform_4(%arg0: i32) -> (i32, i32) {
    %c0_i32 = arith.constant 0 : i32
    %c0_i32_0 = arith.constant 0 : i32
    %c0_i32_1 = arith.constant 0 : i32
    return %c0_i32, %c0_i32_0 : i32, i32
  }
  func.func @transform_5(%arg0: i32) -> (i32, i32) {
    %c0_i32 = arith.constant 0 : i32
    %c0_i32_0 = arith.constant 0 : i32
    %c0_i32_1 = arith.constant 0 : i32
    return %c0_i32, %c0_i32_0 : i32, i32
  }
  func.func @transform_6(%arg0: i32) -> (i32, i32) {
    %c0_i32 = arith.constant 0 : i32
    %c0_i32_0 = arith.constant 0 : i32
    %c0_i32_1 = arith.constant 0 : i32
    return %c0_i32, %c0_i32_0 : i32, i32
  }
  func.func @transform_7(%arg0: i32) -> (i32, i32) {
    %c0_i32 = arith.constant 0 : i32
    %c0_i32_0 = arith.constant 0 : i32
    return %arg0, %c0_i32 : i32, i32
  }
}

</mosaic_0001>

<llo_original>
// kernel: two_tower_forward.1
$region0: #{two_tower_forward.1}
  #allocation0 [shape = 'u32[]', space=smem, size = 0x4, offset = 0x4, fixed_abs, tag = 'smem constant byte address 0x4 - core index']
  #allocation1 [shape = 'u32[144,128]{1,0:T(1,128)}', space=vmem, size = 0x12000, scoped, tag = 'internal scratch']
  %s0 = inlined_call_operand.vmem [shape: f32[8,24], index: 0, kind: input, shape index: {}]
  %s1 = inlined_call_operand.vmem [shape: f32[8,40], index: 1, kind: input, shape index: {}]
  %s2 = inlined_call_operand.vmem [shape: bf16[24,128], index: 2, kind: input, shape index: {}]
  %s3 = inlined_call_operand.vmem [shape: bf16[128,32], index: 3, kind: input, shape index: {}]
  %s4 = inlined_call_operand.vmem [shape: bf16[40,128], index: 4, kind: input, shape index: {}]
  %s5 = inlined_call_operand.vmem [shape: bf16[128,32], index: 5, kind: input, shape index: {}]
  %s6 = inlined_call_operand.vmem [shape: f32[1,512], index: 6, kind: input, shape index: {}]
  %s7 = inlined_call_operand.vmem [shape: f32[8,1], index: 7, kind: output, shape index: {}]
  %s8 = sld [smem:[#allocation0]]
  $region38: #{two_tower_forward.1} parent=0
    _
  %s10 = ssub.s32 1, %s8
  %s11 = scalar_select 0, %s10, %s8
  // Predicated region
  $region2: #{two_tower_forward.1} parent=0 // pred_check
    _
  $region3: #{two_tower_forward.1} parent=0 // pred_check_branch
    %13 = sbr.rel (0) target = $region5
  $region4: #{two_tower_forward.1} parent=0 // pred_region
    _
  $region5: #{two_tower_forward.1} parent=0 // pred_fallthru
    _
  // Predicated region
  $region6: #{two_tower_forward.1} parent=0 // pred_check
    _
  $region7: #{two_tower_forward.1} parent=0 // pred_check_branch
    %15 = sbr.rel (0) target = $region9
  $region8: #{two_tower_forward.1} parent=0 // pred_region
    _
  $region9: #{two_tower_forward.1} parent=0 // pred_fallthru
    _
  // Predicated region
  $region10: #{two_tower_forward.1} parent=0 // pred_check
    _
  $region11: #{two_tower_forward.1} parent=0 // pred_check_branch
    %17 = sbr.rel (0) target = $region13
  $region12: #{two_tower_forward.1} parent=0 // pred_region
    _
  $region13: #{two_tower_forward.1} parent=0 // pred_fallthru
    _
  // Predicated region
  $region14: #{two_tower_forward.1} parent=0 // pred_check
    _
  $region15: #{two_tower_forward.1} parent=0 // pred_check_branch
    %19 = sbr.rel (0) target = $region17
  $region16: #{two_tower_forward.1} parent=0 // pred_region
    _
  $region17: #{two_tower_forward.1} parent=0 // pred_fallthru
    _
  // Predicated region
  $region18: #{two_tower_forward.1} parent=0 // pred_check
    _
  $region19: #{two_tower_forward.1} parent=0 // pred_check_branch
    %21 = sbr.rel (0) target = $region21
  $region20: #{two_tower_forward.1} parent=0 // pred_region
    _
  $region21: #{two_tower_forward.1} parent=0 // pred_fallthru
    _
  // Predicated region
  $region22: #{two_tower_forward.1} parent=0 // pred_check
    _
  $region23: #{two_tower_forward.1} parent=0 // pred_check_branch
    %23 = sbr.rel (0) target = $region25
  $region24: #{two_tower_forward.1} parent=0 // pred_region
    _
  $region25: #{two_tower_forward.1} parent=0 // pred_fallthru
    _
  // Predicated region
  $region26: #{two_tower_forward.1} parent=0 // pred_check
    _
  $region27: #{two_tower_forward.1} parent=0 // pred_check_branch
    %25 = sbr.rel (0) target = $region29
  $region28: #{two_tower_forward.1} parent=0 // pred_region
    _
  $region29: #{two_tower_forward.1} parent=0 // pred_fallthru
    _
  %v27 = vld [vmem:[%s6] sm:$0x1]
  %v28 = vld [vmem:[%s6 + $0x1] sm:$0x1]
  %v29 = vld [vmem:[%s6 + $0x2] sm:$0x1]
  %v30 = vld [vmem:[%s6 + $0x3] sm:$0x1]
  %v31 = vld [vmem:[%s0] sm:$0xff]
  %v32 = vpack.c.bf16 %v31, %v31
  %v33 = vld [vmem:[%s1] sm:$0xff]
  %v34 = vpack.c.bf16 %v33, %v33
  %v35 = vld [vmem:[%s2] sm:$0xf]
  %v36 = vld [vmem:[%s2 + $0x4] sm:$0xf]
  %v37 = vld [vmem:[%s2 + $0x8] sm:$0xf]
  %v39 = vlaneseq
  %v40 = vshrl.u32 %v39, 7
  %v41 = vsub.s32 0, %v40
  %v42 = vrot.slane %v27, %v41
  %v47 = vunpack.c.l.b16 %v35
  %v48 = vunpack.c.l.b16 %v36
  %v49 = vunpack.c.l.b16 %v37
  %v50 = vpack.c.b16 %v48, %v47
  %v51 = vpack.c.b16 %v49, %v49
  %vm53 = vcmask 195584
  %v55 = vsel %vm53, %v32, 0
  %vm57 = vcmask 1043456
  %v59 = vsel %vm57, %v51, 0
  %61 = vmatprep.subr.bf16.mxu0 0
  %62 = vmatpush1.bf16.msra.mxu0 %v50
  %63 = vmatprep.subr.bf16.mxu0 0
  %64 = vmatpush1.bf16.msra.mxu0 %v59
  %65 = vmatprep.subr.bf16.mxu0 0
  %66 = vmatpush1.bf16.msra.mxu0 0
  %67 = vmatprep.subr.bf16.mxu0 0
  %68 = vmatpush1.bf16.msra.mxu0 0
  %69 = vmatprep.subr.bf16.mxu0 0
  %70 = vmatpush1.bf16.msra.mxu0 0
  %71 = vmatprep.subr.bf16.mxu0 0
  %72 = vmatpush1.bf16.msra.mxu0 0
  %73 = vmatprep.subr.bf16.mxu0 0
  %74 = vmatpush1.bf16.msra.mxu0 0
  %75 = vmatprep.subr.bf16.mxu0 0
  %76 = vmatpush1.bf16.msra.mxu0 0
  %77 = vmatprep.subr.bf16.mxu0 0
  %78 = vmatpush1.bf16.msra.mxu0 0
  %79 = vmatprep.subr.bf16.mxu0 0
  %80 = vmatpush1.bf16.msra.mxu0 0
  %81 = vmatprep.subr.bf16.mxu0 0
  %82 = vmatpush1.bf16.msra.mxu0 0
  %83 = vmatprep.subr.bf16.mxu0 0
  %84 = vmatpush1.bf16.msra.mxu0 0
  %85 = vmatprep.subr.bf16.mxu0 0
  %86 = vmatpush1.bf16.msra.mxu0 0
  %87 = vmatprep.subr.bf16.mxu0 0
  %88 = vmatpush1.bf16.msra.mxu0 0
  %89 = vmatprep.subr.bf16.mxu0 0
  %90 = vmatpush1.bf16.msra.mxu0 0
  %91 = vmatprep.subr.bf16.mxu0 0
  %92 = vmatpush1.bf16.msra.mxu0 0
  %93 = vmatprep.mubr.bf16.mxu0 0
  %94 = vmatmul.mubr.bf16.gmra.mrb[0].mxu0 %v55
  %v95 = vpop.f32.mrb[0].mxu0
  %v96 = vadd.f32 %v42, %v95
  %v97 = vpop.f32.mrb[0].mxu0
  %v98 = vpop.f32.mrb[0].mxu0
  %v99 = vpop.f32.mrb[0].mxu0
  %100 = vdwg.mxu0
  %v101 = vmax.f32 %v96, 0.0
  %v102 = vpack.c.bf16 %v101, %v101
  %v103 = vld [vmem:[%s3] sm:$0xf]
  %v104 = vld [vmem:[%s3 + $0x4] sm:$0xf]
  %v105 = vld [vmem:[%s3 + $0x8] sm:$0xf]
  %v106 = vld [vmem:[%s3 + $0xc] sm:$0xf]
  %v107 = vld [vmem:[%s3 + $0x10] sm:$0xf]
  %v108 = vld [vmem:[%s3 + $0x14] sm:$0xf]
  %v109 = vld [vmem:[%s3 + $0x18] sm:$0xf]
  %v110 = vld [vmem:[%s3 + $0x1c] sm:$0xf]
  %v111 = vld [vmem:[%s3 + $0x20] sm:$0xf]
  %v112 = vld [vmem:[%s3 + $0x24] sm:$0xf]
  %v113 = vld [vmem:[%s3 + $0x28] sm:$0xf]
  %v114 = vld [vmem:[%s3 + $0x2c] sm:$0xf]
  %v115 = vld [vmem:[%s3 + $0x30] sm:$0xf]
  %v116 = vld [vmem:[%s3 + $0x34] sm:$0xf]
  %v117 = vld [vmem:[%s3 + $0x38] sm:$0xf]
  %v118 = vld [vmem:[%s3 + $0x3c] sm:$0xf]
  %v120 = vlaneseq
  %v121 = vshrl.u32 %v120, 7
  %v122 = vsub.s32 0, %v121
  %v123 = vrot.slane %v29, %v122
  %v141 = vunpack.c.l.b16 %v103
  %v142 = vunpack.c.l.b16 %v104
  %v143 = vunpack.c.l.b16 %v105
  %v144 = vunpack.c.l.b16 %v106
  %v145 = vunpack.c.l.b16 %v107
  %v146 = vunpack.c.l.b16 %v108
  %v147 = vunpack.c.l.b16 %v109
  %v148 = vunpack.c.l.b16 %v110
  %v149 = vunpack.c.l.b16 %v111
  %v150 = vunpack.c.l.b16 %v112
  %v151 = vunpack.c.l.b16 %v113
  %v152 = vunpack.c.l.b16 %v114
  %v153 = vunpack.c.l.b16 %v115
  %v154 = vunpack.c.l.b16 %v116
  %v155 = vunpack.c.l.b16 %v117
  %v156 = vunpack.c.l.b16 %v118
  %v157 = vpack.c.b16 %v142, %v141
  %v158 = vpack.c.b16 %v144, %v143
  %v159 = vpack.c.b16 %v146, %v145
  %v160 = vpack.c.b16 %v148, %v147
  %v161 = vpack.c.b16 %v150, %v149
  %v162 = vpack.c.b16 %v152, %v151
  %v163 = vpack.c.b16 %v154, %v153
  %v164 = vpack.c.b16 %v156, %v155
  %173 = vmatprep.subr.bf16.mxu0 0
  %174 = vmatpush1.bf16.msra.mxu0 %v157
  %175 = vmatprep.subr.bf16.mxu0 0
  %176 = vmatpush1.bf16.msra.mxu0 %v158
  %177 = vmatprep.subr.bf16.mxu0 0
  %178 = vmatpush1.bf16.msra.mxu0 %v159
  %179 = vmatprep.subr.bf16.mxu0 0
  %180 = vmatpush1.bf16.msra.mxu0 %v160
  %181 = vmatprep.subr.bf16.mxu0 0
  %182 = vmatpush1.bf16.msra.mxu0 %v161
  %183 = vmatprep.subr.bf16.mxu0 0
  %184 = vmatpush1.bf16.msra.mxu0 %v162
  %185 = vmatprep.subr.bf16.mxu0 0
  %186 = vmatpush1.bf16.msra.mxu0 %v163
  %187 = vmatprep.subr.bf16.mxu0 0
  %188 = vmatpush1.bf16.msra.mxu0 %v164
  %189 = vmatprep.subr.bf16.mxu0 0
  %190 = vmatpush1.bf16.msra.mxu0 0
  %191 = vmatprep.subr.bf16.mxu0 0
  %192 = vmatpush1.bf16.msra.mxu0 0
  %193 = vmatprep.subr.bf16.mxu0 0
  %194 = vmatpush1.bf16.msra.mxu0 0
  %195 = vmatprep.subr.bf16.mxu0 0
  %196 = vmatpush1.bf16.msra.mxu0 0
  %197 = vmatprep.subr.bf16.mxu0 0
  %198 = vmatpush1.bf16.msra.mxu0 0
  %199 = vmatprep.subr.bf16.mxu0 0
  %200 = vmatpush1.bf16.msra.mxu0 0
  %201 = vmatprep.subr.bf16.mxu0 0
  %202 = vmatpush1.bf16.msra.mxu0 0
  %203 = vmatprep.subr.bf16.mxu0 0
  %204 = vmatpush1.bf16.msra.mxu0 0
  %205 = vmatprep.mubr.bf16.mxu0 0
  %206 = vmatmul.mubr.bf16.gmra.mrb[0].mxu0 %v102
  %v207 = vpop.f32.mrb[0].mxu0
  %v208 = vadd.f32 %v123, %v207
  %v209 = vpop.f32.mrb[0].mxu0
  %v210 = vpop.f32.mrb[0].mxu0
  %v211 = vpop.f32.mrb[0].mxu0
  %212 = vdwg.mxu0
  %v213 = vld [vmem:[%s4] sm:$0xf]
  %v214 = vld [vmem:[%s4 + $0x4] sm:$0xf]
  %v215 = vld [vmem:[%s4 + $0x8] sm:$0xf]
  %v216 = vld [vmem:[%s4 + $0xc] sm:$0xf]
  %v217 = vld [vmem:[%s4 + $0x10] sm:$0xf]
  %v219 = vlaneseq
  %v220 = vshrl.u32 %v219, 7
  %v221 = vsub.s32 0, %v220
  %v222 = vrot.slane %v28, %v221
  %v229 = vunpack.c.l.b16 %v213
  %v230 = vunpack.c.l.b16 %v214
  %v231 = vunpack.c.l.b16 %v215
  %v232 = vunpack.c.l.b16 %v216
  %v233 = vunpack.c.l.b16 %v217
  %v234 = vpack.c.b16 %v230, %v229
  %v235 = vpack.c.b16 %v232, %v231
  %v236 = vpack.c.b16 %v233, %v233
  %vm239 = vcmask 326656
  %v241 = vsel %vm239, %v34, 0
  %v244 = vsel %vm57, %v236, 0
  %246 = vmatprep.subr.bf16.mxu0 0
  %247 = vmatpush1.bf16.msra.mxu0 %v234
  %248 = vmatprep.subr.bf16.mxu0 0
  %249 = vmatpush1.bf16.msra.mxu0 %v235
  %250 = vmatprep.subr.bf16.mxu0 0
  %251 = vmatpush1.bf16.msra.mxu0 %v244
  %252 = vmatprep.subr.bf16.mxu0 0
  %253 = vmatpush1.bf16.msra.mxu0 0
  %254 = vmatprep.subr.bf16.mxu0 0
  %255 = vmatpush1.bf16.msra.mxu0 0
  %256 = vmatprep.subr.bf16.mxu0 0
  %257 = vmatpush1.bf16.msra.mxu0 0
  %258 = vmatprep.subr.bf16.mxu0 0
  %259 = vmatpush1.bf16.msra.mxu0 0
  %260 = vmatprep.subr.bf16.mxu0 0
  %261 = vmatpush1.bf16.msra.mxu0 0
  %262 = vmatprep.subr.bf16.mxu0 0
  %263 = vmatpush1.bf16.msra.mxu0 0
  %264 = vmatprep.subr.bf16.mxu0 0
  %265 = vmatpush1.bf16.msra.mxu0 0
  %266 = vmatprep.subr.bf16.mxu0 0
  %267 = vmatpush1.bf16.msra.mxu0 0
  %268 = vmatprep.subr.bf16.mxu0 0
  %269 = vmatpush1.bf16.msra.mxu0 0
  %270 = vmatprep.subr.bf16.mxu0 0
  %271 = vmatpush1.bf16.msra.mxu0 0
  %272 = vmatprep.subr.bf16.mxu0 0
  %273 = vmatpush1.bf16.msra.mxu0 0
  %274 = vmatprep.subr.bf16.mxu0 0
  %275 = vmatpush1.bf16.msra.mxu0 0
  %276 = vmatprep.subr.bf16.mxu0 0
  %277 = vmatpush1.bf16.msra.mxu0 0
  %278 = vmatprep.mubr.bf16.mxu0 0
  %279 = vmatmul.mubr.bf16.gmra.mrb[0].mxu0 %v241
  %v280 = vpop.f32.mrb[0].mxu0
  %v281 = vadd.f32 %v222, %v280
  %v282 = vpop.f32.mrb[0].mxu0
  %v283 = vpop.f32.mrb[0].mxu0
  %v284 = vpop.f32.mrb[0].mxu0
  %285 = vdwg.mxu0
  %v286 = vmax.f32 %v281, 0.0
  %v287 = vpack.c.bf16 %v286, %v286
  %v288 = vld [vmem:[%s5] sm:$0xf]
  %v289 = vld [vmem:[%s5 + $0x4] sm:$0xf]
  %v290 = vld [vmem:[%s5 + $0x8] sm:$0xf]
  %v291 = vld [vmem:[%s5 + $0xc] sm:$0xf]
  %v292 = vld [vmem:[%s5 + $0x10] sm:$0xf]
  %v293 = vld [vmem:[%s5 + $0x14] sm:$0xf]
  %v294 = vld [vmem:[%s5 + $0x18] sm:$0xf]
  %v295 = vld [vmem:[%s5 + $0x1c] sm:$0xf]
  %v296 = vld [vmem:[%s5 + $0x20] sm:$0xf]
  %v297 = vld [vmem:[%s5 + $0x24] sm:$0xf]
  %v298 = vld [vmem:[%s5 + $0x28] sm:$0xf]
  %v299 = vld [vmem:[%s5 + $0x2c] sm:$0xf]
  %v300 = vld [vmem:[%s5 + $0x30] sm:$0xf]
  %v301 = vld [vmem:[%s5 + $0x34] sm:$0xf]
  %v302 = vld [vmem:[%s5 + $0x38] sm:$0xf]
  %v303 = vld [vmem:[%s5 + $0x3c] sm:$0xf]
  %v305 = vlaneseq
  %v306 = vshrl.u32 %v305, 7
  %v307 = vsub.s32 0, %v306
  %v308 = vrot.slane %v30, %v307
  %v326 = vunpack.c.l.b16 %v288
  %v327 = vunpack.c.l.b16 %v289
  %v328 = vunpack.c.l.b16 %v290
  %v329 = vunpack.c.l.b16 %v291
  %v330 = vunpack.c.l.b16 %v292
  %v331 = vunpack.c.l.b16 %v293
  %v332 = vunpack.c.l.b16 %v294
  %v333 = vunpack.c.l.b16 %v295
  %v334 = vunpack.c.l.b16 %v296
  %v335 = vunpack.c.l.b16 %v297
  %v336 = vunpack.c.l.b16 %v298
  %v337 = vunpack.c.l.b16 %v299
  %v338 = vunpack.c.l.b16 %v300
  %v339 = vunpack.c.l.b16 %v301
  %v340 = vunpack.c.l.b16 %v302
  %v341 = vunpack.c.l.b16 %v303
  %v342 = vpack.c.b16 %v327, %v326
  %v343 = vpack.c.b16 %v329, %v328
  %v344 = vpack.c.b16 %v331, %v330
  %v345 = vpack.c.b16 %v333, %v332
  %v346 = vpack.c.b16 %v335, %v334
  %v347 = vpack.c.b16 %v337, %v336
  %v348 = vpack.c.b16 %v339, %v338
  %v349 = vpack.c.b16 %v341, %v340
  %358 = vmatprep.subr.bf16.mxu0 0
  %359 = vmatpush1.bf16.msra.mxu0 %v342
  %360 = vmatprep.subr.bf16.mxu0 0
  %361 = vmatpush1.bf16.msra.mxu0 %v343
  %362 = vmatprep.subr.bf16.mxu0 0
  %363 = vmatpush1.bf16.msra.mxu0 %v344
  %364 = vmatprep.subr.bf16.mxu0 0
  %365 = vmatpush1.bf16.msra.mxu0 %v345
  %366 = vmatprep.subr.bf16.mxu0 0
  %367 = vmatpush1.bf16.msra.mxu0 %v346
  %368 = vmatprep.subr.bf16.mxu0 0
  %369 = vmatpush1.bf16.msra.mxu0 %v347
  %370 = vmatprep.subr.bf16.mxu0 0
  %371 = vmatpush1.bf16.msra.mxu0 %v348
  %372 = vmatprep.subr.bf16.mxu0 0
  %373 = vmatpush1.bf16.msra.mxu0 %v349
  %374 = vmatprep.subr.bf16.mxu0 0
  %375 = vmatpush1.bf16.msra.mxu0 0
  %376 = vmatprep.subr.bf16.mxu0 0
  %377 = vmatpush1.bf16.msra.mxu0 0
  %378 = vmatprep.subr.bf16.mxu0 0
  %379 = vmatpush1.bf16.msra.mxu0 0
  %380 = vmatprep.subr.bf16.mxu0 0
  %381 = vmatpush1.bf16.msra.mxu0 0
  %382 = vmatprep.subr.bf16.mxu0 0
  %383 = vmatpush1.bf16.msra.mxu0 0
  %384 = vmatprep.subr.bf16.mxu0 0
  %385 = vmatpush1.bf16.msra.mxu0 0
  %386 = vmatprep.subr.bf16.mxu0 0
  %387 = vmatpush1.bf16.msra.mxu0 0
  %388 = vmatprep.subr.bf16.mxu0 0
  %389 = vmatpush1.bf16.msra.mxu0 0
  %390 = vmatprep.mubr.bf16.mxu0 0
  %391 = vmatmul.mubr.bf16.gmra.mrb[0].mxu0 %v287
  %v392 = vpop.f32.mrb[0].mxu0
  %v393 = vadd.f32 %v308, %v392
  %v394 = vpop.f32.mrb[0].mxu0
  %v395 = vpop.f32.mrb[0].mxu0
  %v396 = vpop.f32.mrb[0].mxu0
  %397 = vdwg.mxu0
  %v398 = vmul.f32 %v208, %v393
  %vm399 = vcmask 261120
  %v401 = vsel %vm399, %v398, 0
  %403 = vmatprep.subr.mxu0 0.0
  %404 = vmatpush1.msra.mxu0 1.0
  %405 = vmatprep.subr.mxu0 0.0
  %406 = vmatpush1.msra.mxu0 1.0
  %407 = vmatprep.subr.mxu0 0.0
  %408 = vmatpush1.msra.mxu0 1.0
  %409 = vmatprep.subr.mxu0 0.0
  %410 = vmatpush1.msra.mxu0 1.0
  %411 = vmatprep.subr.mxu0 0.0
  %412 = vmatpush1.msra.mxu0 0.0
  %413 = vmatprep.subr.mxu0 0.0
  %414 = vmatpush1.msra.mxu0 0.0
  %415 = vmatprep.subr.mxu0 0.0
  %416 = vmatpush1.msra.mxu0 0.0
  %417 = vmatprep.subr.mxu0 0.0
  %418 = vmatpush1.msra.mxu0 0.0
  %419 = vmatprep.subr.mxu0 0.0
  %420 = vmatpush1.msra.mxu0 0.0
  %421 = vmatprep.subr.mxu0 0.0
  %422 = vmatpush1.msra.mxu0 0.0
  %423 = vmatprep.subr.mxu0 0.0
  %424 = vmatpush1.msra.mxu0 0.0
  %425 = vmatprep.subr.mxu0 0.0
  %426 = vmatpush1.msra.mxu0 0.0
  %427 = vmatprep.subr.mxu0 0.0
  %428 = vmatpush1.msra.mxu0 0.0
  %429 = vmatprep.subr.mxu0 0.0
  %430 = vmatpush1.msra.mxu0 0.0
  %431 = vmatprep.subr.mxu0 0.0
  %432 = vmatpush1.msra.mxu0 0.0
  %433 = vmatprep.subr.mxu0 0.0
  %434 = vmatpush1.msra.mxu0 0.0
  %435 = vmatprep.subr.mxu0 0.0
  %436 = vmatpush1.msra.mxu0 0.0
  %437 = vmatprep.subr.mxu0 0.0
  %438 = vmatpush1.msra.mxu0 0.0
  %439 = vmatprep.subr.mxu0 0.0
  %440 = vmatpush1.msra.mxu0 0.0
  %441 = vmatprep.subr.mxu0 0.0
  %442 = vmatpush1.msra.mxu0 0.0
  %443 = vmatprep.subr.mxu0 0.0
  %444 = vmatpush1.msra.mxu0 0.0
  %445 = vmatprep.subr.mxu0 0.0
  %446 = vmatpush1.msra.mxu0 0.0
  %447 = vmatprep.subr.mxu0 0.0
  %448 = vmatpush1.msra.mxu0 0.0
  %449 = vmatprep.subr.mxu0 0.0
  %450 = vmatpush1.msra.mxu0 0.0
  %451 = vmatprep.subr.mxu0 0.0
  %452 = vmatpush1.msra.mxu0 0.0
  %453 = vmatprep.subr.mxu0 0.0
  %454 = vmatpush1.msra.mxu0 0.0
  %455 = vmatprep.subr.mxu0 0.0
  %456 = vmatpush1.msra.mxu0 0.0
  %457 = vmatprep.subr.mxu0 0.0
  %458 = vmatpush1.msra.mxu0 0.0
  %459 = vmatprep.subr.mxu0 0.0
  %460 = vmatpush1.msra.mxu0 0.0
  %461 = vmatprep.subr.mxu0 0.0
  %462 = vmatpush1.msra.mxu0 0.0
  %463 = vmatprep.subr.mxu0 0.0
  %464 = vmatpush1.msra.mxu0 0.0
  %465 = vmatprep.subr.mxu0 0.0
  %466 = vmatpush1.msra.mxu0 0.0
  %467 = vmatprep.mubr.f32.mxu0 0.0
  %468 = vmatmul.mubr.f32.gmra.mrb[0].mxu0 %v401
  %v469 = vpop.f32.mrb[0].mxu0
  %v470 = vadd.f32 0.0, %v469
  %v471 = vpop.f32.mrb[0].mxu0
  %472 = vdwg.mxu0
  %v473 = vxor.u32 %v470, 2147483648
  %v474 = vmul.f32 %v473, 1.442695
  %v475 = vpow.pop %v474
  %v476 = vadd.f32 %v475, 1.0
  %v477 = vrcp.pop %v476
  %v478 = vmul.f32 1.0, %v477
  %vm479 = vcmask 7168
  %480 = vst.msk [vmem:[%s7] sm:$0xff] %vm479, %v478
  // Predicated region
  $region30: #{two_tower_forward.1} parent=0 // pred_check
    _
  $region31: #{two_tower_forward.1} parent=0 // pred_check_branch
    %482 = sbr.rel (0) target = $region33
  $region32: #{two_tower_forward.1} parent=0 // pred_region
    _
  $region33: #{two_tower_forward.1} parent=0 // pred_fallthru
    _
  // Predicated region
  $region34: #{two_tower_forward.1} parent=0 // pred_check
    _
  $region35: #{two_tower_forward.1} parent=0 // pred_check_branch
    %484 = sbr.rel (0) target = $region37
  $region36: #{two_tower_forward.1} parent=0 // pred_region
    _
  $region37: #{two_tower_forward.1} parent=0 // pred_fallthru
    _

</llo_original>
